<compile_context>
chip_gen: v5e
topology: v5e:2x2
jax: 0.10.0
libtpu: 0.0.40
codegen_flags: <defaults>
</compile_context>

<pallas_src>
import functools

import jax
import jax.numpy as jnp
from jax.experimental import pallas as pl
from jax.experimental.pallas import tpu as pltpu


def conv_relu_kernel(x_ref, w_ref, b_ref, o_ref, pad_ref, *, H, W):
    """3x3 conv (padding=1) + bias + ReLU, whole batch in one invocation.

    x_ref:   (N, Cin, H*W)            NCHW input, spatial flattened (lane axis)
    w_ref:   (Cout, 9*Cin)            weight, columns ordered (kh, kw, cin)
    b_ref:   (Cout, 1)                bias
    o_ref:   (N, Cout, H*W)           output (lane-dense stores)
    pad_ref: (N, Cin, H*W + 2*(W+1))  VMEM scratch: flat-spatial zero-padded input
    """
    N, Cin, HW = x_ref.shape
    P = W + 1  # flat-spatial halo on each side

    # In-kernel zero padding: halo stays zero, interior gets the input.
    pad_ref[...] = jnp.zeros_like(pad_ref)
    pad_ref[:, :, P:P + HW] = x_ref[...]

    # Column-validity masks (row overflow lands in the zero halo automatically,
    # only the horizontal wrap between rows needs masking).  Hoisted out of the
    # loops so the broadcast is built exactly once.
    col = jax.lax.broadcasted_iota(jnp.int32, (Cin, HW), 1) % W
    left_ok = col >= 1         # taps with dx = -1 (kw == 0)
    right_ok = col <= W - 2    # taps with dx = +1 (kw == 2)

    w_mat = w_ref[...]         # (Cout, 9*Cin)
    bias = b_ref[...]          # (Cout, 1)

    for n in range(N):  # N is small & static -> unrolled
        taps = []
        for kh in range(3):
            for kw in range(3):
                # Tap value at flat output position p is padded_input[p + kh*W + kw].
                start = kh * W + kw
                t = pad_ref[n, :, start:start + HW]      # (Cin, HW)
                if kw == 0:
                    t = jnp.where(left_ok, t, 0.0)
                elif kw == 2:
                    t = jnp.where(right_ok, t, 0.0)
                taps.append(t)
        patch = jnp.concatenate(taps, axis=0)            # (9*Cin, HW) im2col

        # Single fused MXU matmul (K = 9*Cin = 36), f32 accumulation, then
        # fused bias + ReLU and a lane-dense store.
        # TODO(synk): on v6e/v7x, cast patch/w_mat to bf16 here for 2x MXU rate
        # (would require relaxing the reference tolerance to ~1e-2).
        acc = jnp.dot(w_mat, patch, preferred_element_type=jnp.float32)
        o_ref[n] = jnp.maximum(acc + bias, 0.0).astype(o_ref.dtype)


@jax.jit
def conv_relu(x_nchw, weight_oihw, bias):
    """Equivalent of nn.Conv2d(in_, out, 3, padding=1) followed by ReLU.

    x_nchw:      (N, Cin, H, W)  float32
    weight_oihw: (Cout, Cin, 3, 3)
    bias:        (Cout,)
    returns:     (N, Cout, H, W)
    """
    N, Cin, H, W = x_nchw.shape
    Cout = weight_oihw.shape[0]
    HW = H * W

    # Free reshape: NCHW is already channels-first / spatial-minor.
    x_flat = x_nchw.reshape(N, Cin, HW)
    # Tiny one-time parameter repack (288 floats): (Cout,Cin,3,3) -> (Cout, (kh,kw,cin)).
    w_mat = jnp.transpose(weight_oihw, (0, 2, 3, 1)).reshape(Cout, 9 * Cin)
    b2d = bias.reshape(Cout, 1)

    out_flat = pl.pallas_call(
        functools.partial(conv_relu_kernel, H=H, W=W),
        out_shape=jax.ShapeDtypeStruct((N, Cout, HW), x_nchw.dtype),
        in_specs=[
            pl.BlockSpec(memory_space=pltpu.MemorySpace.VMEM),
            pl.BlockSpec(memory_space=pltpu.MemorySpace.VMEM),
            pl.BlockSpec(memory_space=pltpu.MemorySpace.VMEM),
        ],
        out_specs=pl.BlockSpec(memory_space=pltpu.MemorySpace.VMEM),
        scratch_shapes=[
            pltpu.VMEM((N, Cin, HW + 2 * (W + 1)), jnp.float32),
        ],
    )(x_flat, w_mat, b2d)

    # Metadata-only reshape back to NCHW (no transpose needed).
    return out_flat.reshape(N, Cout, H, W)


if __name__ == "__main__":
    # Shapes consistent with ConvRelu(in_=4, out=8) on a (2, 4, 16, 16) input.
    N, Cin, Cout, H, W = 2, 4, 8, 16, 16

    key = jax.random.PRNGKey(0)
    kx, kw_, kb = jax.random.split(key, 3)
    x = jax.random.normal(kx, (N, Cin, H, W), dtype=jnp.float32)
    # Deterministic synthetic parameters (same shapes as nn.Conv2d(4, 8, 3)).
    weight = jax.random.normal(kw_, (Cout, Cin, 3, 3), dtype=jnp.float32) * 0.1
    bias = jax.random.normal(kb, (Cout,), dtype=jnp.float32) * 0.1

    y = jax.block_until_ready(conv_relu(x, weight, bias))

    # Reference: XLA conv with the same semantics as PyTorch Conv2d(pad=1) + ReLU.
    ref = jax.lax.conv_general_dilated(
        x, weight, window_strides=(1, 1), padding=((1, 1), (1, 1)),
        dimension_numbers=("NCHW", "OIHW", "NCHW"))
    ref = jnp.maximum(ref + bias.reshape(1, Cout, 1, 1), 0.0)

    assert y.shape == (N, Cout, H, W)
    assert jnp.allclose(y, ref, rtol=1e-4, atol=1e-4)

    print("KERNEL_OK")
</pallas_src>

<mosaic_0001>
module attributes {stable_mosaic.version = 11 : i64} {
  func.func @conv_relu_kernel(%arg0: memref<2x4x256xf32, #tpu.memory_space<vmem>>, %arg1: memref<8x36xf32, #tpu.memory_space<vmem>>, %arg2: memref<8x1xf32, #tpu.memory_space<vmem>>, %arg3: memref<2x8x256xf32, #tpu.memory_space<vmem>>, %arg4: memref<2x4x290xf32, #tpu.memory_space<vmem>>) attributes {dimension_semantics = [], scalar_prefetch = 0 : i64, scratch_operands = 1 : i64, tpu.core_type = #tpu.core_type<tc>} {
    %cst = arith.constant 0.000000e+00 : f32
    %0 = vector.broadcast %cst : f32 to vector<2x4x290xf32>
    %c0 = arith.constant 0 : index
    %c0_0 = arith.constant 0 : index
    %c0_1 = arith.constant 0 : index
    %1 = vector.load %arg4[%c0, %c0_0, %c0_1] : memref<2x4x290xf32, #tpu.memory_space<vmem>>, vector<2x4x290xf32>
    tpu.vector_store %arg4[%c0, %c0_0, %c0_1], %0 {strides = array<i32>} : memref<2x4x290xf32, #tpu.memory_space<vmem>>, vector<2x4x290xf32>,
    %c0_2 = arith.constant 0 : index
    %c0_3 = arith.constant 0 : index
    %c0_4 = arith.constant 0 : index
    %2 = vector.load %arg0[%c0_2, %c0_3, %c0_4] : memref<2x4x256xf32, #tpu.memory_space<vmem>>, vector<2x4x256xf32>
    %c0_5 = arith.constant 0 : index
    %c0_6 = arith.constant 0 : index
    %c17 = arith.constant 17 : index
    %3 = vector.load %arg4[%c0_5, %c0_6, %c17] : memref<2x4x290xf32, #tpu.memory_space<vmem>>, vector<2x4x256xf32>
    tpu.vector_store %arg4[%c0_5, %c0_6, %c17], %2 {strides = array<i32>} : memref<2x4x290xf32, #tpu.memory_space<vmem>>, vector<2x4x256xf32>,
    %4 = tpu.iota {dimensions = array<i32: 1>} : vector<4x256xi32>
    %c16_i32 = arith.constant 16 : i32
    %c0_i32 = arith.constant 0 : i32
    %5 = arith.cmpi eq, %c16_i32, %c0_i32 : i32
    %c1_i32 = arith.constant 1 : i32
    %6 = arith.select %5, %c1_i32, %c16_i32 : i32
    %7 = vector.broadcast %6 : i32 to vector<4x256xi32>
    %8 = arith.remsi %4, %7 : vector<4x256xi32>
    %c0_i32_7 = arith.constant 0 : i32
    %9 = vector.broadcast %c0_i32_7 : i32 to vector<4x256xi32>
    %10 = arith.cmpi ne, %8, %9 : vector<4x256xi32>
    %c0_i32_8 = arith.constant 0 : i32
    %11 = vector.broadcast %c0_i32_8 : i32 to vector<4x256xi32>
    %12 = arith.cmpi slt, %8, %11 : vector<4x256xi32>
    %c0_i32_9 = arith.constant 0 : i32
    %13 = arith.cmpi slt, %6, %c0_i32_9 : i32
    %14 = vector.broadcast %13 : i1 to vector<4x256xi1>
    %15 = vector.broadcast %14 : vector<4x256xi1> to vector<4x256xi1>
    %16 = arith.xori %12, %15 : vector<4x256xi1>
    %17 = arith.andi %16, %10 : vector<4x256xi1>
    %18 = vector.broadcast %6 : i32 to vector<4x256xi32>
    %19 = arith.addi %8, %18 : vector<4x256xi32>
    %20 = arith.select %17, %19, %8 : vector<4x256xi1>, vector<4x256xi32>
    %c1_i32_10 = arith.constant 1 : i32
    %21 = vector.broadcast %c1_i32_10 : i32 to vector<4x256xi32>
    %22 = arith.cmpi sge, %20, %21 : vector<4x256xi32>
    %c14_i32 = arith.constant 14 : i32
    %23 = vector.broadcast %c14_i32 : i32 to vector<4x256xi32>
    %24 = arith.cmpi sle, %20, %23 : vector<4x256xi32>
    %c0_11 = arith.constant 0 : index
    %c0_12 = arith.constant 0 : index
    %25 = vector.load %arg1[%c0_11, %c0_12] : memref<8x36xf32, #tpu.memory_space<vmem>>, vector<8x36xf32>
    %c0_13 = arith.constant 0 : index
    %c0_14 = arith.constant 0 : index
    %26 = vector.load %arg2[%c0_13, %c0_14] : memref<8x1xf32, #tpu.memory_space<vmem>>, vector<8x1xf32>
    %c0_15 = arith.constant 0 : index
    %c0_16 = arith.constant 0 : index
    %c0_17 = arith.constant 0 : index
    %27 = vector.load %arg4[%c0_15, %c0_16, %c0_17] : memref<2x4x290xf32, #tpu.memory_space<vmem>>, vector<1x4x256xf32>
    %28 = vector.shape_cast %27 : vector<1x4x256xf32> to vector<4x256xf32>
    %cst_18 = arith.constant 0.000000e+00 : f32
    %29 = vector.broadcast %cst_18 : f32 to vector<4x256xf32>
    %30 = arith.select %22, %28, %29 : vector<4x256xi1>, vector<4x256xf32>
    %c0_19 = arith.constant 0 : index
    %c0_20 = arith.constant 0 : index
    %c1 = arith.constant 1 : index
    %31 = vector.load %arg4[%c0_19, %c0_20, %c1] : memref<2x4x290xf32, #tpu.memory_space<vmem>>, vector<1x4x256xf32>
    %32 = vector.shape_cast %31 : vector<1x4x256xf32> to vector<4x256xf32>
    %c0_21 = arith.constant 0 : index
    %c0_22 = arith.constant 0 : index
    %c2 = arith.constant 2 : index
    %33 = vector.load %arg4[%c0_21, %c0_22, %c2] : memref<2x4x290xf32, #tpu.memory_space<vmem>>, vector<1x4x256xf32>
    %34 = vector.shape_cast %33 : vector<1x4x256xf32> to vector<4x256xf32>
    %cst_23 = arith.constant 0.000000e+00 : f32
    %35 = vector.broadcast %cst_23 : f32 to vector<4x256xf32>
    %36 = arith.select %24, %34, %35 : vector<4x256xi1>, vector<4x256xf32>
    %c0_24 = arith.constant 0 : index
    %c0_25 = arith.constant 0 : index
    %c16 = arith.constant 16 : index
    %37 = vector.load %arg4[%c0_24, %c0_25, %c16] : memref<2x4x290xf32, #tpu.memory_space<vmem>>, vector<1x4x256xf32>
    %38 = vector.shape_cast %37 : vector<1x4x256xf32> to vector<4x256xf32>
    %cst_26 = arith.constant 0.000000e+00 : f32
    %39 = vector.broadcast %cst_26 : f32 to vector<4x256xf32>
    %40 = arith.select %22, %38, %39 : vector<4x256xi1>, vector<4x256xf32>
    %c0_27 = arith.constant 0 : index
    %c0_28 = arith.constant 0 : index
    %c17_29 = arith.constant 17 : index
    %41 = vector.load %arg4[%c0_27, %c0_28, %c17_29] : memref<2x4x290xf32, #tpu.memory_space<vmem>>, vector<1x4x256xf32>
    %42 = vector.shape_cast %41 : vector<1x4x256xf32> to vector<4x256xf32>
    %c0_30 = arith.constant 0 : index
    %c0_31 = arith.constant 0 : index
    %c18 = arith.constant 18 : index
    %43 = vector.load %arg4[%c0_30, %c0_31, %c18] : memref<2x4x290xf32, #tpu.memory_space<vmem>>, vector<1x4x256xf32>
    %44 = vector.shape_cast %43 : vector<1x4x256xf32> to vector<4x256xf32>
    %cst_32 = arith.constant 0.000000e+00 : f32
    %45 = vector.broadcast %cst_32 : f32 to vector<4x256xf32>
    %46 = arith.select %24, %44, %45 : vector<4x256xi1>, vector<4x256xf32>
    %c0_33 = arith.constant 0 : index
    %c0_34 = arith.constant 0 : index
    %c32 = arith.constant 32 : index
    %47 = vector.load %arg4[%c0_33, %c0_34, %c32] : memref<2x4x290xf32, #tpu.memory_space<vmem>>, vector<1x4x256xf32>
    %48 = vector.shape_cast %47 : vector<1x4x256xf32> to vector<4x256xf32>
    %cst_35 = arith.constant 0.000000e+00 : f32
    %49 = vector.broadcast %cst_35 : f32 to vector<4x256xf32>
    %50 = arith.select %22, %48, %49 : vector<4x256xi1>, vector<4x256xf32>
    %c0_36 = arith.constant 0 : index
    %c0_37 = arith.constant 0 : index
    %c33 = arith.constant 33 : index
    %51 = vector.load %arg4[%c0_36, %c0_37, %c33] : memref<2x4x290xf32, #tpu.memory_space<vmem>>, vector<1x4x256xf32>
    %52 = vector.shape_cast %51 : vector<1x4x256xf32> to vector<4x256xf32>
    %c0_38 = arith.constant 0 : index
    %c0_39 = arith.constant 0 : index
    %c34 = arith.constant 34 : index
    %53 = vector.load %arg4[%c0_38, %c0_39, %c34] : memref<2x4x290xf32, #tpu.memory_space<vmem>>, vector<1x4x256xf32>
    %54 = vector.shape_cast %53 : vector<1x4x256xf32> to vector<4x256xf32>
    %cst_40 = arith.constant 0.000000e+00 : f32
    %55 = vector.broadcast %cst_40 : f32 to vector<4x256xf32>
    %56 = arith.select %24, %54, %55 : vector<4x256xi1>, vector<4x256xf32>
    %57 = tpu.concatenate %30, %32, %36, %40, %42, %46, %50, %52, %56 in 0 : vector<4x256xf32>, vector<4x256xf32>, vector<4x256xf32>, vector<4x256xf32>, vector<4x256xf32>, vector<4x256xf32>, vector<4x256xf32>, vector<4x256xf32>, vector<4x256xf32> -> vector<36x256xf32>
    %cst_41 = arith.constant dense<0.000000e+00> : vector<8x256xf32>
    %58 = tpu.matmul %25, %57, %cst_41 {dimension_numbers = #tpu.dot_dimension_numbers<[1], [0], [0], [1], [0, 0, 1, 1], [], []>} : vector<8x36xf32>, vector<36x256xf32>, vector<8x256xf32> -> vector<8x256xf32>
    %59 = vector.broadcast %26 : vector<8x1xf32> to vector<8x256xf32>
    %60 = arith.addf %58, %59 : vector<8x256xf32>
    %cst_42 = arith.constant 0.000000e+00 : f32
    %61 = vector.broadcast %cst_42 : f32 to vector<8x256xf32>
    %62 = arith.maximumf %60, %61 : vector<8x256xf32>
    %c0_43 = arith.constant 0 : index
    %c0_44 = arith.constant 0 : index
    %c0_45 = arith.constant 0 : index
    %63 = vector.load %arg3[%c0_43, %c0_44, %c0_45] : memref<2x8x256xf32, #tpu.memory_space<vmem>>, vector<1x8x256xf32>
    %64 = vector.shape_cast %63 : vector<1x8x256xf32> to vector<8x256xf32>
    %65 = vector.shape_cast %62 : vector<8x256xf32> to vector<1x8x256xf32>
    tpu.vector_store %arg3[%c0_43, %c0_44, %c0_45], %65 {strides = array<i32>} : memref<2x8x256xf32, #tpu.memory_space<vmem>>, vector<1x8x256xf32>,
    %c1_46 = arith.constant 1 : index
    %c0_47 = arith.constant 0 : index
    %c0_48 = arith.constant 0 : index
    %66 = vector.load %arg4[%c1_46, %c0_47, %c0_48] : memref<2x4x290xf32, #tpu.memory_space<vmem>>, vector<1x4x256xf32>
    %67 = vector.shape_cast %66 : vector<1x4x256xf32> to vector<4x256xf32>
    %cst_49 = arith.constant 0.000000e+00 : f32
    %68 = vector.broadcast %cst_49 : f32 to vector<4x256xf32>
    %69 = arith.select %22, %67, %68 : vector<4x256xi1>, vector<4x256xf32>
    %c1_50 = arith.constant 1 : index
    %c0_51 = arith.constant 0 : index
    %c1_52 = arith.constant 1 : index
    %70 = vector.load %arg4[%c1_50, %c0_51, %c1_52] : memref<2x4x290xf32, #tpu.memory_space<vmem>>, vector<1x4x256xf32>
    %71 = vector.shape_cast %70 : vector<1x4x256xf32> to vector<4x256xf32>
    %c1_53 = arith.constant 1 : index
    %c0_54 = arith.constant 0 : index
    %c2_55 = arith.constant 2 : index
    %72 = vector.load %arg4[%c1_53, %c0_54, %c2_55] : memref<2x4x290xf32, #tpu.memory_space<vmem>>, vector<1x4x256xf32>
    %73 = vector.shape_cast %72 : vector<1x4x256xf32> to vector<4x256xf32>
    %cst_56 = arith.constant 0.000000e+00 : f32
    %74 = vector.broadcast %cst_56 : f32 to vector<4x256xf32>
    %75 = arith.select %24, %73, %74 : vector<4x256xi1>, vector<4x256xf32>
    %c1_57 = arith.constant 1 : index
    %c0_58 = arith.constant 0 : index
    %c16_59 = arith.constant 16 : index
    %76 = vector.load %arg4[%c1_57, %c0_58, %c16_59] : memref<2x4x290xf32, #tpu.memory_space<vmem>>, vector<1x4x256xf32>
    %77 = vector.shape_cast %76 : vector<1x4x256xf32> to vector<4x256xf32>
    %cst_60 = arith.constant 0.000000e+00 : f32
    %78 = vector.broadcast %cst_60 : f32 to vector<4x256xf32>
    %79 = arith.select %22, %77, %78 : vector<4x256xi1>, vector<4x256xf32>
    %c1_61 = arith.constant 1 : index
    %c0_62 = arith.constant 0 : index
    %c17_63 = arith.constant 17 : index
    %80 = vector.load %arg4[%c1_61, %c0_62, %c17_63] : memref<2x4x290xf32, #tpu.memory_space<vmem>>, vector<1x4x256xf32>
    %81 = vector.shape_cast %80 : vector<1x4x256xf32> to vector<4x256xf32>
    %c1_64 = arith.constant 1 : index
    %c0_65 = arith.constant 0 : index
    %c18_66 = arith.constant 18 : index
    %82 = vector.load %arg4[%c1_64, %c0_65, %c18_66] : memref<2x4x290xf32, #tpu.memory_space<vmem>>, vector<1x4x256xf32>
    %83 = vector.shape_cast %82 : vector<1x4x256xf32> to vector<4x256xf32>
    %cst_67 = arith.constant 0.000000e+00 : f32
    %84 = vector.broadcast %cst_67 : f32 to vector<4x256xf32>
    %85 = arith.select %24, %83, %84 : vector<4x256xi1>, vector<4x256xf32>
    %c1_68 = arith.constant 1 : index
    %c0_69 = arith.constant 0 : index
    %c32_70 = arith.constant 32 : index
    %86 = vector.load %arg4[%c1_68, %c0_69, %c32_70] : memref<2x4x290xf32, #tpu.memory_space<vmem>>, vector<1x4x256xf32>
    %87 = vector.shape_cast %86 : vector<1x4x256xf32> to vector<4x256xf32>
    %cst_71 = arith.constant 0.000000e+00 : f32
    %88 = vector.broadcast %cst_71 : f32 to vector<4x256xf32>
    %89 = arith.select %22, %87, %88 : vector<4x256xi1>, vector<4x256xf32>
    %c1_72 = arith.constant 1 : index
    %c0_73 = arith.constant 0 : index
    %c33_74 = arith.constant 33 : index
    %90 = vector.load %arg4[%c1_72, %c0_73, %c33_74] : memref<2x4x290xf32, #tpu.memory_space<vmem>>, vector<1x4x256xf32>
    %91 = vector.shape_cast %90 : vector<1x4x256xf32> to vector<4x256xf32>
    %c1_75 = arith.constant 1 : index
    %c0_76 = arith.constant 0 : index
    %c34_77 = arith.constant 34 : index
    %92 = vector.load %arg4[%c1_75, %c0_76, %c34_77] : memref<2x4x290xf32, #tpu.memory_space<vmem>>, vector<1x4x256xf32>
    %93 = vector.shape_cast %92 : vector<1x4x256xf32> to vector<4x256xf32>
    %cst_78 = arith.constant 0.000000e+00 : f32
    %94 = vector.broadcast %cst_78 : f32 to vector<4x256xf32>
    %95 = arith.select %24, %93, %94 : vector<4x256xi1>, vector<4x256xf32>
    %96 = tpu.concatenate %69, %71, %75, %79, %81, %85, %89, %91, %95 in 0 : vector<4x256xf32>, vector<4x256xf32>, vector<4x256xf32>, vector<4x256xf32>, vector<4x256xf32>, vector<4x256xf32>, vector<4x256xf32>, vector<4x256xf32>, vector<4x256xf32> -> vector<36x256xf32>
    %cst_79 = arith.constant dense<0.000000e+00> : vector<8x256xf32>
    %97 = tpu.matmul %25, %96, %cst_79 {dimension_numbers = #tpu.dot_dimension_numbers<[1], [0], [0], [1], [0, 0, 1, 1], [], []>} : vector<8x36xf32>, vector<36x256xf32>, vector<8x256xf32> -> vector<8x256xf32>
    %98 = vector.broadcast %26 : vector<8x1xf32> to vector<8x256xf32>
    %99 = arith.addf %97, %98 : vector<8x256xf32>
    %cst_80 = arith.constant 0.000000e+00 : f32
    %100 = vector.broadcast %cst_80 : f32 to vector<8x256xf32>
    %101 = arith.maximumf %99, %100 : vector<8x256xf32>
    %c1_81 = arith.constant 1 : index
    %c0_82 = arith.constant 0 : index
    %c0_83 = arith.constant 0 : index
    %102 = vector.load %arg3[%c1_81, %c0_82, %c0_83] : memref<2x8x256xf32, #tpu.memory_space<vmem>>, vector<1x8x256xf32>
    %103 = vector.shape_cast %102 : vector<1x8x256xf32> to vector<8x256xf32>
    %104 = vector.shape_cast %101 : vector<8x256xf32> to vector<1x8x256xf32>
    tpu.vector_store %arg3[%c1_81, %c0_82, %c0_83], %104 {strides = array<i32>} : memref<2x8x256xf32, #tpu.memory_space<vmem>>, vector<1x8x256xf32>,
    return
  }
}

</mosaic_0001>

<llo_original>
// kernel: conv_relu.1
$region0: #{conv_relu.1}
  #allocation0 [shape = 'u32[]', space=smem, size = 0x4, offset = 0x4, fixed_abs, tag = 'smem constant byte address 0x4 - core index']
  #allocation1 [shape = 'u32[72,128]{1,0:T(1,128)}', space=vmem, size = 0x9000, scoped, tag = 'internal scratch']
  #allocation2 [shape = 'f32[2,4,290]{2,1,0:T(4,128)}', space=vmem, size = 0x3000, scoped, tag = 'scratch operand']
  %s0 = inlined_call_operand.vmem [shape: f32[2,4,256], index: 0, kind: input, shape index: {}]
  %s1 = inlined_call_operand.vmem [shape: f32[8,36], index: 1, kind: input, shape index: {}]
  %s2 = inlined_call_operand.vmem [shape: f32[8,1], index: 2, kind: input, shape index: {}]
  %s3 = inlined_call_operand.vmem [shape: f32[2,8,256], index: 3, kind: output, shape index: {}]
  %s4 = sld [smem:[#allocation0]]
  $region22: #{conv_relu.1} parent=0
    _
  %s6 = ssub.s32 1, %s4
  %s7 = scalar_select 0, %s6, %s4
  // Predicated region
  $region2: #{conv_relu.1} parent=0 // pred_check
    _
  $region3: #{conv_relu.1} parent=0 // pred_check_branch
    %9 = sbr.rel (0) target = $region5
  $region4: #{conv_relu.1} parent=0 // pred_region
    _
  $region5: #{conv_relu.1} parent=0 // pred_fallthru
    _
  // Predicated region
  $region6: #{conv_relu.1} parent=0 // pred_check
    _
  $region7: #{conv_relu.1} parent=0 // pred_check_branch
    %11 = sbr.rel (0) target = $region9
  $region8: #{conv_relu.1} parent=0 // pred_region
    _
  $region9: #{conv_relu.1} parent=0 // pred_fallthru
    _
  // Predicated region
  $region10: #{conv_relu.1} parent=0 // pred_check
    _
  $region11: #{conv_relu.1} parent=0 // pred_check_branch
    %13 = sbr.rel (0) target = $region13
  $region12: #{conv_relu.1} parent=0 // pred_region
    _
  $region13: #{conv_relu.1} parent=0 // pred_fallthru
    _
  %14 = vst [vmem:[#allocation2] sm:$0xff] 0.0
  %vm15 = vcmask 273408
  %16 = vst.msk [vmem:[#allocation2 + $0x8] sm:$0xf] %vm15, 0.0
  %17 = vst [vmem:[#allocation2 + $0xc] sm:$0xff] 0.0
  %18 = vst.msk [vmem:[#allocation2 + $0x14] sm:$0xf] %vm15, 0.0
  %v19 = vld [vmem:[%s0] sm:$0xff]
  %v20 = vld [vmem:[%s0 + $0x8] sm:$0xff]
  %23 = vrot.lane.b32.xlu0 %v19, 17
  %v24 = vpop.permute.xlu0 %23
  %25 = vrot.lane.b32.xlu0 %v20, 17
  %v26 = vpop.permute.xlu0 %25
  %v27 = vrot.slane %v24, 4
  %v28 = vrot.slane %v26, 4
  %vm29 = vcmask 138240
  %v30 = vsel %vm29, %v27, %v24
  %v31 = vsel %vm29, %v28, %v26
  %vm36 = vcmask 1043592
  %vm37 = vcmask 1047556
  %vm38 = vmor %vm37, %vm36
  %39 = vst.msk [vmem:[#allocation2] sm:$0xff] %vm38, %v30
  %vm40 = vcmask 134144
  %41 = vst.msk [vmem:[#allocation2 + $0x8] sm:$0xf] %vm40, %v27
  %42 = vst.msk [vmem:[#allocation2 + $0xc] sm:$0xff] %vm38, %v31
  %43 = vst.msk [vmem:[#allocation2 + $0x14] sm:$0xf] %vm40, %v28
  %v44 = vlaneseq
  %v45 = vand.u32 %v44, 127
  %v46 = vadd.s32 %v45, 128
  %vm47 = vcmp.lt.s32.totalorder %v45, 0
  %v48 = vsub.s32 0, %v45
  %v49 = vsel %vm47, %v48, %v45
  %v50 = vshrl.u32 %v49, 4
  %v51 = vand.u32 %v49, 15
  %v52 = vsub.s32 0, %v51
  %v53 = vsel %vm47, %v52, %v51
  %vm54 = vcmp.lt.s32.totalorder %v46, 0
  %v55 = vsub.s32 0, %v46
  %v56 = vsel %vm54, %v55, %v46
  %v57 = vshrl.u32 %v56, 4
  %v58 = vand.u32 %v56, 15
  %v59 = vsub.s32 0, %v58
  %v60 = vsel %vm54, %v59, %v58
  %vm61 = vcmp.ne.s32.totalorder %v53, 0
  %vm62 = vcmp.ne.s32.totalorder %v60, 0
  %vm63 = vcmp.lt.s32.totalorder %v53, 0
  %vm64 = vcmp.lt.s32.totalorder %v60, 0
  %vm65 = vmand %vm63, %vm61
  %vm66 = vmand %vm64, %vm62
  %v67 = vadd.s32 %v53, 16
  %v68 = vadd.s32 %v60, 16
  %v69 = vsel %vm65, %v67, %v53
  %v70 = vsel %vm66, %v68, %v60
  %vm71 = vcmp.ge.s32.totalorder %v69, 1
  %vm72 = vcmp.ge.s32.totalorder %v70, 1
  %vm73 = vcmp.le.s32.totalorder %v69, 14
  %vm74 = vcmp.le.s32.totalorder %v70, 14
  %v75 = vld [vmem:[%s1] sm:$0xff]
  %v76 = vld [vmem:[%s2] sm:$0xff]
  %v77 = vld [vmem:[#allocation2] sm:$0xff]
  %79 = vst [vmem:[#allocation1] ss:$2 sm:$0xff] %v77
  %v80 = vld.sshfl [vmem:[#allocation1] sm:$0xff pattern:$0x75316420]
  %v81 = vld.sshfl [vmem:[#allocation1 + $0x8] sm:$0xff pattern:$0x75316420]
  %v84 = vsel %vm71, %v80, 0.0
  %v85 = vsel %vm72, %v81, 0.0
  %v86 = vld [vmem:[#allocation2] sm:$0xff]
  %v87 = vld [vmem:[#allocation2 + $0x8] sm:$0xf]
  %90 = vst [vmem:[#allocation1] ss:$2 sm:$0xff] %v86
  %s91 = scalar_lea.vmem [#allocation1], 16
  %92 = vst [vmem:[%s91] ss:$2 sm:$0xff] %v87
  %v93 = vld.sshfl [vmem:[#allocation1] sm:$0xff pattern:$0x75316420]
  %v94 = vld.sshfl [vmem:[#allocation1 + $0x8] sm:$0xff pattern:$0x75316420]
  %v95 = vld.sshfl [vmem:[#allocation1 + $0x10] sm:$0xff pattern:$0x75316420]
  %96 = vrot.lane.b32.xlu0 %v93, 126
  %v97 = vpop.permute.xlu0 %96
  %98 = vrot.lane.b32.xlu0 %v94, 126
  %v99 = vpop.permute.xlu0 %98
  %100 = vrot.lane.b32.xlu0 %v95, 126
  %v101 = vpop.permute.xlu0 %100
  %vm102 = vcmask 1031168
  %v103 = vsel %vm102, %v97, %v99
  %v104 = vsel %vm102, %v99, %v101
  %v107 = vsel %vm73, %v103, 0.0
  %v108 = vsel %vm74, %v104, 0.0
  %v109 = vld [vmem:[#allocation2] sm:$0xff]
  %v110 = vld [vmem:[#allocation2 + $0x8] sm:$0xf]
  %113 = vst [vmem:[#allocation1] ss:$2 sm:$0xff] %v109
  %s114 = scalar_lea.vmem [#allocation1], 16
  %115 = vst [vmem:[%s114] ss:$2 sm:$0xff] %v110
  %v116 = vld.sshfl [vmem:[#allocation1] sm:$0xff pattern:$0x75316420]
  %v117 = vld.sshfl [vmem:[#allocation1 + $0x8] sm:$0xff pattern:$0x75316420]
  %v118 = vld.sshfl [vmem:[#allocation1 + $0x10] sm:$0xff pattern:$0x75316420]
  %119 = vrot.lane.b32.xlu0 %v116, 112
  %v120 = vpop.permute.xlu0 %119
  %121 = vrot.lane.b32.xlu0 %v117, 112
  %v122 = vpop.permute.xlu0 %121
  %123 = vrot.lane.b32.xlu0 %v118, 112
  %v124 = vpop.permute.xlu0 %123
  %vm125 = vcmask 916480
  %v126 = vsel %vm125, %v120, %v122
  %v127 = vsel %vm125, %v122, %v124
  %v130 = vsel %vm71, %v126, 0.0
  %v131 = vsel %vm72, %v127, 0.0
  %v132 = vld [vmem:[#allocation2] sm:$0xff]
  %v133 = vld [vmem:[#allocation2 + $0x8] sm:$0xf]
  %136 = vst [vmem:[#allocation1] ss:$2 sm:$0xff] %v132
  %s137 = scalar_lea.vmem [#allocation1], 16
  %138 = vst [vmem:[%s137] ss:$2 sm:$0xff] %v133
  %v139 = vld.sshfl [vmem:[#allocation1] sm:$0xff pattern:$0x75316420]
  %v140 = vld.sshfl [vmem:[#allocation1 + $0x8] sm:$0xff pattern:$0x75316420]
  %v141 = vld.sshfl [vmem:[#allocation1 + $0x10] sm:$0xff pattern:$0x75316420]
  %142 = vrot.lane.b32.xlu0 %v139, 110
  %v143 = vpop.permute.xlu0 %142
  %144 = vrot.lane.b32.xlu0 %v140, 110
  %v145 = vpop.permute.xlu0 %144
  %146 = vrot.lane.b32.xlu0 %v141, 110
  %v147 = vpop.permute.xlu0 %146
  %vm148 = vcmask 900096
  %v149 = vsel %vm148, %v143, %v145
  %v150 = vsel %vm148, %v145, %v147
  %v153 = vsel %vm73, %v149, 0.0
  %v154 = vsel %vm74, %v150, 0.0
  %v155 = vld [vmem:[#allocation2] sm:$0xff]
  %v156 = vld [vmem:[#allocation2 + $0x8] sm:$0xf]
  %159 = vst [vmem:[#allocation1] ss:$2 sm:$0xff] %v155
  %s160 = scalar_lea.vmem [#allocation1], 16
  %161 = vst [vmem:[%s160] ss:$2 sm:$0xff] %v156
  %v162 = vld.sshfl [vmem:[#allocation1] sm:$0xff pattern:$0x75316420]
  %v163 = vld.sshfl [vmem:[#allocation1 + $0x8] sm:$0xff pattern:$0x75316420]
  %v164 = vld.sshfl [vmem:[#allocation1 + $0x10] sm:$0xff pattern:$0x75316420]
  %165 = vrot.lane.b32.xlu0 %v162, 96
  %v166 = vpop.permute.xlu0 %165
  %167 = vrot.lane.b32.xlu0 %v163, 96
  %v168 = vpop.permute.xlu0 %167
  %169 = vrot.lane.b32.xlu0 %v164, 96
  %v170 = vpop.permute.xlu0 %169
  %vm171 = vcmask 785408
  %v172 = vsel %vm171, %v166, %v168
  %v173 = vsel %vm171, %v168, %v170
  %v176 = vsel %vm71, %v172, 0.0
  %v177 = vsel %vm72, %v173, 0.0
  %v178 = vld [vmem:[#allocation2] sm:$0xff]
  %v179 = vld [vmem:[#allocation2 + $0x8] sm:$0xf]
  %182 = vst [vmem:[#allocation1] ss:$2 sm:$0xff] %v178
  %s183 = scalar_lea.vmem [#allocation1], 16
  %184 = vst [vmem:[%s183] ss:$2 sm:$0xff] %v179
  %v185 = vld.sshfl [vmem:[#allocation1] sm:$0xff pattern:$0x75316420]
  %v186 = vld.sshfl [vmem:[#allocation1 + $0x8] sm:$0xff pattern:$0x75316420]
  %v187 = vld.sshfl [vmem:[#allocation1 + $0x10] sm:$0xff pattern:$0x75316420]
  %188 = vrot.lane.b32.xlu0 %v185, 94
  %v189 = vpop.permute.xlu0 %188
  %190 = vrot.lane.b32.xlu0 %v186, 94
  %v191 = vpop.permute.xlu0 %190
  %192 = vrot.lane.b32.xlu0 %v187, 94
  %v193 = vpop.permute.xlu0 %192
  %vm194 = vcmask 769024
  %v195 = vsel %vm194, %v189, %v191
  %v196 = vsel %vm194, %v191, %v193
  %v199 = vsel %vm73, %v195, 0.0
  %v200 = vsel %vm74, %v196, 0.0
  %s201 = scalar_lea.vmem [#allocation1], 1
  %202 = vst [vmem:[%s201] ss:$2 sm:$0xff] %v86
  %s203 = scalar_lea.vmem [#allocation1], 17
  %204 = vst [vmem:[%s203] ss:$2 sm:$0xff] %v87
  %v205 = vld.sshfl [vmem:[#allocation1] sm:$0xff pattern:$0x75316420]
  %v206 = vld.sshfl [vmem:[#allocation1 + $0x8] sm:$0xff pattern:$0x75316420]
  %v207 = vld.sshfl [vmem:[#allocation1 + $0x10] sm:$0xff pattern:$0x75316420]
  %208 = vrot.lane.b32.xlu0 %v205, 127
  %v209 = vpop.permute.xlu0 %208
  %210 = vrot.lane.b32.xlu0 %v206, 127
  %v211 = vpop.permute.xlu0 %210
  %212 = vrot.lane.b32.xlu0 %v207, 127
  %v213 = vpop.permute.xlu0 %212
  %vm214 = vcmask 1039360
  %v215 = vsel %vm214, %v209, %v211
  %v216 = vsel %vm214, %v211, %v213
  %v221 = vrot.slane %v130, 4
  %v222 = vrot.slane %v131, 4
  %225 = vst [vmem:[#allocation1] ss:$2 sm:$0xff] %v132
  %s226 = scalar_lea.vmem [#allocation1], 16
  %227 = vst [vmem:[%s226] ss:$2 sm:$0xff] %v133
  %v228 = vld.sshfl [vmem:[#allocation1] sm:$0xff pattern:$0x75316420]
  %v229 = vld.sshfl [vmem:[#allocation1 + $0x8] sm:$0xff pattern:$0x75316420]
  %v230 = vld.sshfl [vmem:[#allocation1 + $0x10] sm:$0xff pattern:$0x75316420]
  %231 = vrot.lane.b32.xlu0 %v228, 111
  %v232 = vpop.permute.xlu0 %231
  %233 = vrot.lane.b32.xlu0 %v229, 111
  %v234 = vpop.permute.xlu0 %233
  %235 = vrot.lane.b32.xlu0 %v230, 111
  %v236 = vpop.permute.xlu0 %235
  %vm237 = vcmask 908288
  %v238 = vsel %vm237, %v232, %v234
  %v239 = vsel %vm237, %v234, %v236
  %v244 = vrot.slane %v153, 4
  %v245 = vrot.slane %v154, 4
  %s248 = scalar_lea.vmem [#allocation1], 1
  %249 = vst [vmem:[%s248] ss:$2 sm:$0xff] %v178
  %s250 = scalar_lea.vmem [#allocation1], 17
  %251 = vst [vmem:[%s250] ss:$2 sm:$0xff] %v179
  %v252 = vld.sshfl [vmem:[#allocation1] sm:$0xff pattern:$0x75316420]
  %v253 = vld.sshfl [vmem:[#allocation1 + $0x8] sm:$0xff pattern:$0x75316420]
  %v254 = vld.sshfl [vmem:[#allocation1 + $0x10] sm:$0xff pattern:$0x75316420]
  %255 = vrot.lane.b32.xlu0 %v252, 95
  %v256 = vpop.permute.xlu0 %255
  %257 = vrot.lane.b32.xlu0 %v253, 95
  %v258 = vpop.permute.xlu0 %257
  %259 = vrot.lane.b32.xlu0 %v254, 95
  %v260 = vpop.permute.xlu0 %259
  %vm261 = vcmask 777216
  %v262 = vsel %vm261, %v256, %v258
  %v263 = vsel %vm261, %v258, %v260
  %vm266 = vcmask 1043456
  %v267 = vsel %vm266, %v84, %v215
  %v268 = vsel %vm266, %v85, %v216
  %v269 = vsel %vm266, %v107, %v221
  %v270 = vsel %vm266, %v108, %v222
  %v271 = vsel %vm266, %v238, %v244
  %v272 = vsel %vm266, %v239, %v245
  %v273 = vsel %vm266, %v176, %v262
  %v274 = vsel %vm266, %v177, %v263
  %276 = vset.pattern.permute.xlu0 0
  %277 = vperm.xlu0 %276, %v76
  %v278 = vpop.permute.xlu0 %277
  %vm280 = vcmask 293888
  %v282 = vsel %vm280, %v75, 0
  %v285 = vsel %vm266, %v199, 0
  %v288 = vsel %vm266, %v200, 0
  %290 = vmatpush.msra.mxu0 0.0
  %291 = vmatpush.msra.mxu0 0.0
  %292 = vmatpush.msra.mxu0 0.0
  %293 = vmatpush.msra.mxu0 0.0
  %294 = vmatpush.msra.mxu0 0.0
  %295 = vmatpush.msra.mxu0 0.0
  %296 = vmatpush.msra.mxu0 0.0
  %297 = vmatpush.msra.mxu0 0.0
  %298 = vmatpush.msra.mxu0 0.0
  %299 = vmatpush.msra.mxu0 0.0
  %300 = vmatpush.msra.mxu0 0.0
  %301 = vmatpush.msra.mxu0 %v285
  %302 = vmatpush.msra.mxu0 %v273
  %303 = vmatpush.msra.mxu0 %v271
  %304 = vmatpush.msra.mxu0 %v269
  %305 = vmatpush.msra.mxu0 %v267
  %306 = vmatmul.f32.gmra.mxu0 %v282
  %v307 = vpop.f32.mrf.mxu0
  %v308 = vadd.f32 %v278, %v307
  %309 = vdwg.mxu0
  %310 = vmatpush.msra.mxu0 0.0
  %311 = vmatpush.msra.mxu0 0.0
  %312 = vmatpush.msra.mxu0 0.0
  %313 = vmatpush.msra.mxu0 0.0
  %314 = vmatpush.msra.mxu0 0.0
  %315 = vmatpush.msra.mxu0 0.0
  %316 = vmatpush.msra.mxu0 0.0
  %317 = vmatpush.msra.mxu0 0.0
  %318 = vmatpush.msra.mxu0 0.0
  %319 = vmatpush.msra.mxu0 0.0
  %320 = vmatpush.msra.mxu0 0.0
  %321 = vmatpush.msra.mxu0 %v288
  %322 = vmatpush.msra.mxu0 %v274
  %323 = vmatpush.msra.mxu0 %v272
  %324 = vmatpush.msra.mxu0 %v270
  %325 = vmatpush.msra.mxu0 %v268
  %326 = vmatmul.f32.gmra.mxu0 %v282
  %v327 = vpop.f32.mrf.mxu0
  %v328 = vadd.f32 %v278, %v327
  %329 = vdwg.mxu0
  %v330 = vmax.f32 %v308, 0.0
  %v331 = vmax.f32 %v328, 0.0
  %332 = vst [vmem:[%s3] sm:$0xff] %v330
  %333 = vst [vmem:[%s3 + $0x8] sm:$0xff] %v331
  %s334 = scalar_lea.vmem [#allocation2], 12
  %v335 = vld [vmem:[%s334] sm:$0xff]
  %337 = vst [vmem:[#allocation1] ss:$2 sm:$0xff] %v335
  %v338 = vld.sshfl [vmem:[#allocation1] sm:$0xff pattern:$0x75316420]
  %v339 = vld.sshfl [vmem:[#allocation1 + $0x8] sm:$0xff pattern:$0x75316420]
  %v342 = vsel %vm71, %v338, 0.0
  %v343 = vsel %vm72, %v339, 0.0
  %v344 = vld [vmem:[%s334] sm:$0xff]
  %v345 = vld [vmem:[%s334 + $0x8] sm:$0xf]
  %348 = vst [vmem:[#allocation1] ss:$2 sm:$0xff] %v344
  %s349 = scalar_lea.vmem [#allocation1], 16
  %350 = vst [vmem:[%s349] ss:$2 sm:$0xff] %v345
  %v351 = vld.sshfl [vmem:[#allocation1] sm:$0xff pattern:$0x75316420]
  %v352 = vld.sshfl [vmem:[#allocation1 + $0x8] sm:$0xff pattern:$0x75316420]
  %v353 = vld.sshfl [vmem:[#allocation1 + $0x10] sm:$0xff pattern:$0x75316420]
  %354 = vrot.lane.b32.xlu0 %v351, 126
  %v355 = vpop.permute.xlu0 %354
  %356 = vrot.lane.b32.xlu0 %v352, 126
  %v357 = vpop.permute.xlu0 %356
  %358 = vrot.lane.b32.xlu0 %v353, 126
  %v359 = vpop.permute.xlu0 %358
  %v360 = vsel %vm102, %v355, %v357
  %v361 = vsel %vm102, %v357, %v359
  %v364 = vsel %vm73, %v360, 0.0
  %v365 = vsel %vm74, %v361, 0.0
  %v366 = vld [vmem:[%s334] sm:$0xff]
  %v367 = vld [vmem:[%s334 + $0x8] sm:$0xf]
  %370 = vst [vmem:[#allocation1] ss:$2 sm:$0xff] %v366
  %s371 = scalar_lea.vmem [#allocation1], 16
  %372 = vst [vmem:[%s371] ss:$2 sm:$0xff] %v367
  %v373 = vld.sshfl [vmem:[#allocation1] sm:$0xff pattern:$0x75316420]
  %v374 = vld.sshfl [vmem:[#allocation1 + $0x8] sm:$0xff pattern:$0x75316420]
  %v375 = vld.sshfl [vmem:[#allocation1 + $0x10] sm:$0xff pattern:$0x75316420]
  %376 = vrot.lane.b32.xlu0 %v373, 112
  %v377 = vpop.permute.xlu0 %376
  %378 = vrot.lane.b32.xlu0 %v374, 112
  %v379 = vpop.permute.xlu0 %378
  %380 = vrot.lane.b32.xlu0 %v375, 112
  %v381 = vpop.permute.xlu0 %380
  %v382 = vsel %vm125, %v377, %v379
  %v383 = vsel %vm125, %v379, %v381
  %v386 = vsel %vm71, %v382, 0.0
  %v387 = vsel %vm72, %v383, 0.0
  %v388 = vld [vmem:[%s334] sm:$0xff]
  %v389 = vld [vmem:[%s334 + $0x8] sm:$0xf]
  %392 = vst [vmem:[#allocation1] ss:$2 sm:$0xff] %v388
  %s393 = scalar_lea.vmem [#allocation1], 16
  %394 = vst [vmem:[%s393] ss:$2 sm:$0xff] %v389
  %v395 = vld.sshfl [vmem:[#allocation1] sm:$0xff pattern:$0x75316420]
  %v396 = vld.sshfl [vmem:[#allocation1 + $0x8] sm:$0xff pattern:$0x75316420]
  %v397 = vld.sshfl [vmem:[#allocation1 + $0x10] sm:$0xff pattern:$0x75316420]
  %398 = vrot.lane.b32.xlu0 %v395, 110
  %v399 = vpop.permute.xlu0 %398
  %400 = vrot.lane.b32.xlu0 %v396, 110
  %v401 = vpop.permute.xlu0 %400
  %402 = vrot.lane.b32.xlu0 %v397, 110
  %v403 = vpop.permute.xlu0 %402
  %v404 = vsel %vm148, %v399, %v401
  %v405 = vsel %vm148, %v401, %v403
  %v408 = vsel %vm73, %v404, 0.0
  %v409 = vsel %vm74, %v405, 0.0
  %v410 = vld [vmem:[%s334] sm:$0xff]
  %v411 = vld [vmem:[%s334 + $0x8] sm:$0xf]
  %414 = vst [vmem:[#allocation1] ss:$2 sm:$0xff] %v410
  %s415 = scalar_lea.vmem [#allocation1], 16
  %416 = vst [vmem:[%s415] ss:$2 sm:$0xff] %v411
  %v417 = vld.sshfl [vmem:[#allocation1] sm:$0xff pattern:$0x75316420]
  %v418 = vld.sshfl [vmem:[#allocation1 + $0x8] sm:$0xff pattern:$0x75316420]
  %v419 = vld.sshfl [vmem:[#allocation1 + $0x10] sm:$0xff pattern:$0x75316420]
  %420 = vrot.lane.b32.xlu0 %v417, 96
  %v421 = vpop.permute.xlu0 %420
  %422 = vrot.lane.b32.xlu0 %v418, 96
  %v423 = vpop.permute.xlu0 %422
  %424 = vrot.lane.b32.xlu0 %v419, 96
  %v425 = vpop.permute.xlu0 %424
  %v426 = vsel %vm171, %v421, %v423
  %v427 = vsel %vm171, %v423, %v425
  %v430 = vsel %vm71, %v426, 0.0
  %v431 = vsel %vm72, %v427, 0.0
  %v432 = vld [vmem:[%s334] sm:$0xff]
  %v433 = vld [vmem:[%s334 + $0x8] sm:$0xf]
  %436 = vst [vmem:[#allocation1] ss:$2 sm:$0xff] %v432
  %s437 = scalar_lea.vmem [#allocation1], 16
  %438 = vst [vmem:[%s437] ss:$2 sm:$0xff] %v433
  %v439 = vld.sshfl [vmem:[#allocation1] sm:$0xff pattern:$0x75316420]
  %v440 = vld.sshfl [vmem:[#allocation1 + $0x8] sm:$0xff pattern:$0x75316420]
  %v441 = vld.sshfl [vmem:[#allocation1 + $0x10] sm:$0xff pattern:$0x75316420]
  %442 = vrot.lane.b32.xlu0 %v439, 94
  %v443 = vpop.permute.xlu0 %442
  %444 = vrot.lane.b32.xlu0 %v440, 94
  %v445 = vpop.permute.xlu0 %444
  %446 = vrot.lane.b32.xlu0 %v441, 94
  %v447 = vpop.permute.xlu0 %446
  %v448 = vsel %vm194, %v443, %v445
  %v449 = vsel %vm194, %v445, %v447
  %v452 = vsel %vm73, %v448, 0.0
  %v453 = vsel %vm74, %v449, 0.0
  %s454 = scalar_lea.vmem [#allocation1], 1
  %455 = vst [vmem:[%s454] ss:$2 sm:$0xff] %v344
  %s456 = scalar_lea.vmem [#allocation1], 17
  %457 = vst [vmem:[%s456] ss:$2 sm:$0xff] %v345
  %v458 = vld.sshfl [vmem:[#allocation1] sm:$0xff pattern:$0x75316420]
  %v459 = vld.sshfl [vmem:[#allocation1 + $0x8] sm:$0xff pattern:$0x75316420]
  %v460 = vld.sshfl [vmem:[#allocation1 + $0x10] sm:$0xff pattern:$0x75316420]
  %461 = vrot.lane.b32.xlu0 %v458, 127
  %v462 = vpop.permute.xlu0 %461
  %463 = vrot.lane.b32.xlu0 %v459, 127
  %v464 = vpop.permute.xlu0 %463
  %465 = vrot.lane.b32.xlu0 %v460, 127
  %v466 = vpop.permute.xlu0 %465
  %v467 = vsel %vm214, %v462, %v464
  %v468 = vsel %vm214, %v464, %v466
  %v473 = vrot.slane %v386, 4
  %v474 = vrot.slane %v387, 4
  %477 = vst [vmem:[#allocation1] ss:$2 sm:$0xff] %v388
  %s478 = scalar_lea.vmem [#allocation1], 16
  %479 = vst [vmem:[%s478] ss:$2 sm:$0xff] %v389
  %v480 = vld.sshfl [vmem:[#allocation1] sm:$0xff pattern:$0x75316420]
  %v481 = vld.sshfl [vmem:[#allocation1 + $0x8] sm:$0xff pattern:$0x75316420]
  %v482 = vld.sshfl [vmem:[#allocation1 + $0x10] sm:$0xff pattern:$0x75316420]
  %483 = vrot.lane.b32.xlu0 %v480, 111
  %v484 = vpop.permute.xlu0 %483
  %485 = vrot.lane.b32.xlu0 %v481, 111
  %v486 = vpop.permute.xlu0 %485
  %487 = vrot.lane.b32.xlu0 %v482, 111
  %v488 = vpop.permute.xlu0 %487
  %v489 = vsel %vm237, %v484, %v486
  %v490 = vsel %vm237, %v486, %v488
  %v495 = vrot.slane %v408, 4
  %v496 = vrot.slane %v409, 4
  %s499 = scalar_lea.vmem [#allocation1], 1
  %500 = vst [vmem:[%s499] ss:$2 sm:$0xff] %v432
  %s501 = scalar_lea.vmem [#allocation1], 17
  %502 = vst [vmem:[%s501] ss:$2 sm:$0xff] %v433
  %v503 = vld.sshfl [vmem:[#allocation1] sm:$0xff pattern:$0x75316420]
  %v504 = vld.sshfl [vmem:[#allocation1 + $0x8] sm:$0xff pattern:$0x75316420]
  %v505 = vld.sshfl [vmem:[#allocation1 + $0x10] sm:$0xff pattern:$0x75316420]
  %506 = vrot.lane.b32.xlu0 %v503, 95
  %v507 = vpop.permute.xlu0 %506
  %508 = vrot.lane.b32.xlu0 %v504, 95
  %v509 = vpop.permute.xlu0 %508
  %510 = vrot.lane.b32.xlu0 %v505, 95
  %v511 = vpop.permute.xlu0 %510
  %v512 = vsel %vm261, %v507, %v509
  %v513 = vsel %vm261, %v509, %v511
  %v516 = vsel %vm266, %v342, %v467
  %v517 = vsel %vm266, %v343, %v468
  %v518 = vsel %vm266, %v364, %v473
  %v519 = vsel %vm266, %v365, %v474
  %v520 = vsel %vm266, %v489, %v495
  %v521 = vsel %vm266, %v490, %v496
  %v522 = vsel %vm266, %v430, %v512
  %v523 = vsel %vm266, %v431, %v513
  %v525 = vsel %vm266, %v452, 0
  %v528 = vsel %vm266, %v453, 0
  %530 = vmatpush.msra.mxu0 0.0
  %531 = vmatpush.msra.mxu0 0.0
  %532 = vmatpush.msra.mxu0 0.0
  %533 = vmatpush.msra.mxu0 0.0
  %534 = vmatpush.msra.mxu0 0.0
  %535 = vmatpush.msra.mxu0 0.0
  %536 = vmatpush.msra.mxu0 0.0
  %537 = vmatpush.msra.mxu0 0.0
  %538 = vmatpush.msra.mxu0 0.0
  %539 = vmatpush.msra.mxu0 0.0
  %540 = vmatpush.msra.mxu0 0.0
  %541 = vmatpush.msra.mxu0 %v525
  %542 = vmatpush.msra.mxu0 %v522
  %543 = vmatpush.msra.mxu0 %v520
  %544 = vmatpush.msra.mxu0 %v518
  %545 = vmatpush.msra.mxu0 %v516
  %546 = vmatmul.f32.gmra.mxu0 %v282
  %v547 = vpop.f32.mrf.mxu0
  %v548 = vadd.f32 %v278, %v547
  %549 = vdwg.mxu0
  %550 = vmatpush.msra.mxu0 0.0
  %551 = vmatpush.msra.mxu0 0.0
  %552 = vmatpush.msra.mxu0 0.0
  %553 = vmatpush.msra.mxu0 0.0
  %554 = vmatpush.msra.mxu0 0.0
  %555 = vmatpush.msra.mxu0 0.0
  %556 = vmatpush.msra.mxu0 0.0
  %557 = vmatpush.msra.mxu0 0.0
  %558 = vmatpush.msra.mxu0 0.0
  %559 = vmatpush.msra.mxu0 0.0
  %560 = vmatpush.msra.mxu0 0.0
  %561 = vmatpush.msra.mxu0 %v528
  %562 = vmatpush.msra.mxu0 %v523
  %563 = vmatpush.msra.mxu0 %v521
  %564 = vmatpush.msra.mxu0 %v519
  %565 = vmatpush.msra.mxu0 %v517
  %566 = vmatmul.f32.gmra.mxu0 %v282
  %v567 = vpop.f32.mrf.mxu0
  %v568 = vadd.f32 %v278, %v567
  %569 = vdwg.mxu0
  %v570 = vmax.f32 %v548, 0.0
  %v571 = vmax.f32 %v568, 0.0
  %s572 = scalar_lea.vmem %s3, 16
  %573 = vst [vmem:[%s572] sm:$0xff] %v570
  %574 = vst [vmem:[%s572 + $0x8] sm:$0xff] %v571
  // Predicated region
  $region14: #{conv_relu.1} parent=0 // pred_check
    _
  $region15: #{conv_relu.1} parent=0 // pred_check_branch
    %576 = sbr.rel (0) target = $region17
  $region16: #{conv_relu.1} parent=0 // pred_region
    _
  $region17: #{conv_relu.1} parent=0 // pred_fallthru
    _
  // Predicated region
  $region18: #{conv_relu.1} parent=0 // pred_check
    _
  $region19: #{conv_relu.1} parent=0 // pred_check_branch
    %578 = sbr.rel (0) target = $region21
  $region20: #{conv_relu.1} parent=0 // pred_region
    _
  $region21: #{conv_relu.1} parent=0 // pred_fallthru
    _

</llo_original>
